<compile_context>
chip_gen: v5e
topology: v5e:2x2
jax: 0.10.0
libtpu: 0.0.40
codegen_flags: <defaults>
</compile_context>

<pallas_src>
import math
import functools

import jax
import jax.numpy as jnp
from jax.experimental import pallas as pl
from jax.experimental.pallas import tpu as pltpu


def _round_up(x, m):
    return (x + m - 1) // m * m


def _hyper_kernel(x_ref, w1_ref, b1_ref, w2_ref, b2_ref, out_ref):
    # x: (TB, meta_v_dim) tile; W1: (meta_v_dim, 2H); W2: (2H, N_pad)
    x = x_ref[...]

    # Fused first layer for both heads: Linear -> ReLU
    h = jnp.dot(x, w1_ref[...], preferred_element_type=jnp.float32) + b1_ref[...]
    h = jnp.maximum(h, 0.0)

    # Fused (block-diagonal) second layer -> one lane-dense output slab.
    out_ref[...] = (
        jnp.dot(h, w2_ref[...], preferred_element_type=jnp.float32) + b2_ref[...]
    ).astype(out_ref.dtype)


@functools.partial(
    jax.jit, static_argnames=("output_dim", "dynamic_hidden_dim", "batch_tile")
)
def hypernetwork_2layer_forward(
    meta_v, params, *, output_dim, dynamic_hidden_dim, batch_tile=256
):
    """Pallas implementation of HyperNetwork2Layer.forward.

    meta_v: (B, meta_v_dim) float32
    returns (w, b) with shapes (B, output_dim, dynamic_hidden_dim) and
    (B, output_dim, 1), matching the PyTorch module.
    """
    (w1w, b1w, w2w, b2w, w1b, b1b, w2b, b2b) = params
    B, meta_v_dim = meta_v.shape
    H = w1w.shape[1]

    n_w = output_dim * dynamic_hidden_dim
    n_b = output_dim
    n_raw = n_w + n_b
    n_pad = _round_up(n_raw, 128)  # lane-dense output width

    # ---- Fuse the two heads' parameters (done once per call, outside kernel) ----
    # First layer: concatenate along the output axis -> (meta_v_dim, 2H).
    w1_cat = jnp.concatenate([w1w, w1b], axis=1)
    b1_cat = jnp.concatenate([b1w, b1b], axis=1)
    # Second layer: block-diagonal -> (2H, n_pad), zero-padded to 128 lanes.
    w2_cat = jnp.zeros((2 * H, n_pad), dtype=jnp.float32)
    w2_cat = w2_cat.at[:H, :n_w].set(w2w)
    w2_cat = w2_cat.at[H:, n_w:n_raw].set(w2b)
    b2_cat = jnp.zeros((1, n_pad), dtype=jnp.float32)
    b2_cat = b2_cat.at[:, :n_w].set(b2w)
    b2_cat = b2_cat.at[:, n_w:n_raw].set(b2b)

    # ---- Batch tiling (TB multiple of 8 f32 sublanes) ----
    tb = min(int(batch_tile), _round_up(B, 8))
    tb = _round_up(tb, 8)
    b_pad = _round_up(B, tb)
    x = meta_v
    if b_pad != B:
        x = jnp.pad(x, ((0, b_pad - B), (0, 0)))
    grid = (b_pad // tb,)

    # ---- Specs: x/out stream over the batch grid; weights are resident ----
    x_spec = pl.BlockSpec((tb, meta_v_dim), lambda i: (i, 0))
    w1_spec = pl.BlockSpec((meta_v_dim, 2 * H), lambda i: (0, 0))
    b1_spec = pl.BlockSpec((1, 2 * H), lambda i: (0, 0))
    w2_spec = pl.BlockSpec((2 * H, n_pad), lambda i: (0, 0))
    b2_spec = pl.BlockSpec((1, n_pad), lambda i: (0, 0))
    out_spec = pl.BlockSpec((tb, n_pad), lambda i: (i, 0))

    flops = 2 * b_pad * (meta_v_dim * 2 * H + 2 * H * n_pad)
    bytes_accessed = 4 * (
        b_pad * meta_v_dim            # x
        + meta_v_dim * 2 * H + 2 * H  # W1, b1
        + 2 * H * n_pad + n_pad       # W2, b2
        + b_pad * n_pad               # output slab
    )

    out = pl.pallas_call(
        _hyper_kernel,
        out_shape=jax.ShapeDtypeStruct((b_pad, n_pad), jnp.float32),
        grid=grid,
        in_specs=[x_spec, w1_spec, b1_spec, w2_spec, b2_spec],
        out_specs=out_spec,
        compiler_params=pltpu.CompilerParams(
            dimension_semantics=("parallel",),
            vmem_limit_bytes=64 * 1024 * 1024,
        ),
        cost_estimate=pl.CostEstimate(
            flops=flops, transcendentals=0, bytes_accessed=bytes_accessed
        ),
    )(x, w1_cat, b1_cat, w2_cat, b2_cat)

    out = out[:B]
    # Glue reshapes (exact PyTorch .view row-major semantics):
    w = out[:, :n_w].reshape(B, output_dim, dynamic_hidden_dim)
    b = out[:, n_w:n_raw].reshape(B, output_dim, 1)
    return w, b


def init_params(key, meta_v_dim, hyper_hidden_dim, dynamic_hidden_dim, output_dim):
    """Deterministic init mirroring the module's init_layers:
    weights ~ U(-1/sqrt(2*fan_in), 1/sqrt(2*fan_in)),
    biases  ~ U(-1/sqrt(fan_in), 1/sqrt(fan_in))  (default PyTorch Linear bias init).
    Weights are returned pre-transposed to (in_dim, out_dim).
    """
    def linear(k, fan_in, fan_out):
        kw, kb = jax.random.split(k)
        w_bound = 1.0 / math.sqrt(2 * fan_in)
        b_bound = 1.0 / math.sqrt(fan_in)
        w = jax.random.uniform(kw, (fan_in, fan_out), jnp.float32, -w_bound, w_bound)
        b = jax.random.uniform(kb, (1, fan_out), jnp.float32, -b_bound, b_bound)
        return w, b

    k1, k2, k3, k4 = jax.random.split(key, 4)
    w1w, b1w = linear(k1, meta_v_dim, hyper_hidden_dim)
    w2w, b2w = linear(k2, hyper_hidden_dim, dynamic_hidden_dim * output_dim)
    w1b, b1b = linear(k3, meta_v_dim, hyper_hidden_dim)
    w2b, b2b = linear(k4, hyper_hidden_dim, output_dim)
    return (w1w, b1w, w2w, b2w, w1b, b1b, w2b, b2b)


def _reference_forward(meta_v, params, output_dim, dynamic_hidden_dim):
    (w1w, b1w, w2w, b2w, w1b, b1b, w2b, b2b) = params
    h_w = jnp.maximum(meta_v @ w1w + b1w, 0.0)
    w_flat = h_w @ w2w + b2w
    h_b = jnp.maximum(meta_v @ w1b + b1b, 0.0)
    b_flat = h_b @ w2b + b2b
    B = meta_v.shape[0]
    return (
        w_flat.reshape(B, output_dim, dynamic_hidden_dim),
        b_flat.reshape(B, output_dim, 1),
    )


if __name__ == "__main__":
    # Small shapes consistent with the module's forward.
    batch = 2
    meta_v_dim = 8
    hyper_hidden_dim = 32
    dynamic_hidden_dim = 16
    output_dim = 4

    key = jax.random.PRNGKey(0)
    k_params, k_x = jax.random.split(key)

    params = init_params(
        k_params, meta_v_dim, hyper_hidden_dim, dynamic_hidden_dim, output_dim
    )
    meta_v = jax.random.normal(k_x, (batch, meta_v_dim), jnp.float32)

    w, b = hypernetwork_2layer_forward(
        meta_v, params, output_dim=output_dim, dynamic_hidden_dim=dynamic_hidden_dim
    )
    jax.block_until_ready((w, b))

    # Sanity check against a pure-JAX reference.
    w_ref, b_ref = _reference_forward(meta_v, params, output_dim, dynamic_hidden_dim)
    assert w.shape == (batch, output_dim, dynamic_hidden_dim)
    assert b.shape == (batch, output_dim, 1)
    assert jnp.allclose(w, w_ref, atol=1e-5, rtol=1e-5)
    assert jnp.allclose(b, b_ref, atol=1e-5, rtol=1e-5)

    print("KERNEL_OK")
</pallas_src>

<mosaic_0001>
module attributes {stable_mosaic.version = 11 : i64} {
  func.func @_hyper_kernel(%arg0: i32, %arg1: memref<8x8xf32, #tpu.memory_space<vmem>>, %arg2: memref<8x64xf32, #tpu.memory_space<vmem>>, %arg3: memref<1x64xf32, #tpu.memory_space<vmem>>, %arg4: memref<64x128xf32, #tpu.memory_space<vmem>>, %arg5: memref<1x128xf32, #tpu.memory_space<vmem>>, %arg6: memref<8x128xf32, #tpu.memory_space<vmem>>) attributes {dimension_semantics = [#tpu.dimension_semantics<parallel>], iteration_bounds = array<i64: 1>, scalar_prefetch = 0 : i64, scratch_operands = 0 : i64, tpu.core_type = #tpu.core_type<tc>, window_params = [{transform_indices = @transform_0, window_bounds = array<i64: 8, 8>}, {pipeline_mode = #tpu.pipeline_mode<synchronous>, transform_indices = @transform_1, window_bounds = array<i64: 8, 64>}, {pipeline_mode = #tpu.pipeline_mode<synchronous>, transform_indices = @transform_2, window_bounds = array<i64: 1, 64>}, {pipeline_mode = #tpu.pipeline_mode<synchronous>, transform_indices = @transform_3, window_bounds = array<i64: 64, 128>}, {pipeline_mode = #tpu.pipeline_mode<synchronous>, transform_indices = @transform_4, window_bounds = array<i64: 1, 128>}, {transform_indices = @transform_5, window_bounds = array<i64: 8, 128>}]} {
    %c0 = arith.constant 0 : index
    %c0_0 = arith.constant 0 : index
    %0 = vector.load %arg1[%c0, %c0_0] : memref<8x8xf32, #tpu.memory_space<vmem>>, vector<8x8xf32>
    %c0_1 = arith.constant 0 : index
    %c0_2 = arith.constant 0 : index
    %1 = vector.load %arg2[%c0_1, %c0_2] : memref<8x64xf32, #tpu.memory_space<vmem>>, vector<8x64xf32>
    %cst = arith.constant dense<0.000000e+00> : vector<8x64xf32>
    %2 = tpu.matmul %0, %1, %cst {dimension_numbers = #tpu.dot_dimension_numbers<[1], [0], [0], [1], [0, 0, 1, 1], [], []>} : vector<8x8xf32>, vector<8x64xf32>, vector<8x64xf32> -> vector<8x64xf32>
    %c0_3 = arith.constant 0 : index
    %c0_4 = arith.constant 0 : index
    %3 = vector.load %arg3[%c0_3, %c0_4] : memref<1x64xf32, #tpu.memory_space<vmem>>, vector<1x64xf32>
    %4 = vector.broadcast %3 : vector<1x64xf32> to vector<8x64xf32>
    %5 = arith.addf %2, %4 : vector<8x64xf32>
    %cst_5 = arith.constant 0.000000e+00 : f32
    %6 = vector.broadcast %cst_5 : f32 to vector<8x64xf32>
    %7 = arith.maximumf %5, %6 : vector<8x64xf32>
    %c0_6 = arith.constant 0 : index
    %c0_7 = arith.constant 0 : index
    %8 = vector.load %arg4[%c0_6, %c0_7] : memref<64x128xf32, #tpu.memory_space<vmem>>, vector<64x128xf32>
    %cst_8 = arith.constant dense<0.000000e+00> : vector<8x128xf32>
    %9 = tpu.matmul %7, %8, %cst_8 {dimension_numbers = #tpu.dot_dimension_numbers<[1], [0], [0], [1], [0, 0, 1, 1], [], []>} : vector<8x64xf32>, vector<64x128xf32>, vector<8x128xf32> -> vector<8x128xf32>
    %c0_9 = arith.constant 0 : index
    %c0_10 = arith.constant 0 : index
    %10 = vector.load %arg5[%c0_9, %c0_10] : memref<1x128xf32, #tpu.memory_space<vmem>>, vector<1x128xf32>
    %11 = vector.broadcast %10 : vector<1x128xf32> to vector<8x128xf32>
    %12 = arith.addf %9, %11 : vector<8x128xf32>
    %c0_11 = arith.constant 0 : index
    %c0_12 = arith.constant 0 : index
    %13 = vector.load %arg6[%c0_11, %c0_12] : memref<8x128xf32, #tpu.memory_space<vmem>>, vector<8x128xf32>
    tpu.vector_store %arg6[%c0_11, %c0_12], %12 {strides = array<i32>} : memref<8x128xf32, #tpu.memory_space<vmem>>, vector<8x128xf32>,
    return
  }
  func.func @transform_0(%arg0: i32) -> (i32, i32) {
    %c0_i32 = arith.constant 0 : i32
    %c0_i32_0 = arith.constant 0 : i32
    return %arg0, %c0_i32 : i32, i32
  }
  func.func @transform_1(%arg0: i32) -> (i32, i32) {
    %c0_i32 = arith.constant 0 : i32
    %c0_i32_0 = arith.constant 0 : i32
    %c0_i32_1 = arith.constant 0 : i32
    return %c0_i32, %c0_i32_0 : i32, i32
  }
  func.func @transform_2(%arg0: i32) -> (i32, i32) {
    %c0_i32 = arith.constant 0 : i32
    %c0_i32_0 = arith.constant 0 : i32
    %c0_i32_1 = arith.constant 0 : i32
    return %c0_i32, %c0_i32_0 : i32, i32
  }
  func.func @transform_3(%arg0: i32) -> (i32, i32) {
    %c0_i32 = arith.constant 0 : i32
    %c0_i32_0 = arith.constant 0 : i32
    %c0_i32_1 = arith.constant 0 : i32
    return %c0_i32, %c0_i32_0 : i32, i32
  }
  func.func @transform_4(%arg0: i32) -> (i32, i32) {
    %c0_i32 = arith.constant 0 : i32
    %c0_i32_0 = arith.constant 0 : i32
    %c0_i32_1 = arith.constant 0 : i32
    return %c0_i32, %c0_i32_0 : i32, i32
  }
  func.func @transform_5(%arg0: i32) -> (i32, i32) {
    %c0_i32 = arith.constant 0 : i32
    %c0_i32_0 = arith.constant 0 : i32
    return %arg0, %c0_i32 : i32, i32
  }
}

</mosaic_0001>

<llo_original>
// kernel: hypernetwork_2layer_forward.1
$region0: #{hypernetwork_2layer_forward.1}
  #allocation0 [shape = 'u32[]', space=smem, size = 0x4, offset = 0x4, fixed_abs, tag = 'smem constant byte address 0x4 - core index']
  #allocation1 [shape = 'u32[72,128]{1,0:T(1,128)}', space=vmem, size = 0x9000, scoped, tag = 'internal scratch']
  %s0 = inlined_call_operand.vmem [shape: f32[8,8], index: 0, kind: input, shape index: {}]
  %s1 = inlined_call_operand.vmem [shape: f32[8,64], index: 1, kind: input, shape index: {}]
  %s2 = inlined_call_operand.vmem [shape: f32[1,64], index: 2, kind: input, shape index: {}]
  %s3 = inlined_call_operand.vmem [shape: f32[64,128], index: 3, kind: input, shape index: {}]
  %s4 = inlined_call_operand.vmem [shape: f32[1,128], index: 4, kind: input, shape index: {}]
  %s5 = inlined_call_operand.vmem [shape: f32[8,128], index: 5, kind: output, shape index: {}]
  %s6 = sld [smem:[#allocation0]]
  $region30: #{hypernetwork_2layer_forward.1} parent=0
    _
  %s8 = ssub.s32 1, %s6
  %s9 = scalar_select 0, %s8, %s6
  // Predicated region
  $region2: #{hypernetwork_2layer_forward.1} parent=0 // pred_check
    _
  $region3: #{hypernetwork_2layer_forward.1} parent=0 // pred_check_branch
    %11 = sbr.rel (0) target = $region5
  $region4: #{hypernetwork_2layer_forward.1} parent=0 // pred_region
    _
  $region5: #{hypernetwork_2layer_forward.1} parent=0 // pred_fallthru
    _
  // Predicated region
  $region6: #{hypernetwork_2layer_forward.1} parent=0 // pred_check
    _
  $region7: #{hypernetwork_2layer_forward.1} parent=0 // pred_check_branch
    %13 = sbr.rel (0) target = $region9
  $region8: #{hypernetwork_2layer_forward.1} parent=0 // pred_region
    _
  $region9: #{hypernetwork_2layer_forward.1} parent=0 // pred_fallthru
    _
  // Predicated region
  $region10: #{hypernetwork_2layer_forward.1} parent=0 // pred_check
    _
  $region11: #{hypernetwork_2layer_forward.1} parent=0 // pred_check_branch
    %15 = sbr.rel (0) target = $region13
  $region12: #{hypernetwork_2layer_forward.1} parent=0 // pred_region
    _
  $region13: #{hypernetwork_2layer_forward.1} parent=0 // pred_fallthru
    _
  // Predicated region
  $region14: #{hypernetwork_2layer_forward.1} parent=0 // pred_check
    _
  $region15: #{hypernetwork_2layer_forward.1} parent=0 // pred_check_branch
    %17 = sbr.rel (0) target = $region17
  $region16: #{hypernetwork_2layer_forward.1} parent=0 // pred_region
    _
  $region17: #{hypernetwork_2layer_forward.1} parent=0 // pred_fallthru
    _
  // Predicated region
  $region18: #{hypernetwork_2layer_forward.1} parent=0 // pred_check
    _
  $region19: #{hypernetwork_2layer_forward.1} parent=0 // pred_check_branch
    %19 = sbr.rel (0) target = $region21
  $region20: #{hypernetwork_2layer_forward.1} parent=0 // pred_region
    _
  $region21: #{hypernetwork_2layer_forward.1} parent=0 // pred_fallthru
    _
  %v20 = vld [vmem:[%s0] sm:$0xff]
  %v21 = vld [vmem:[%s1] sm:$0xff]
  %v22 = vld [vmem:[%s2] sm:$0x1]
  %v24 = vperm.slane %v22, 0
  %vm26 = vcmask 64512
  %v28 = vsel %vm26, %v20, 0
  %30 = vmatpush.msra.mxu0 0.0
  %31 = vmatpush.msra.mxu0 0.0
  %32 = vmatpush.msra.mxu0 0.0
  %33 = vmatpush.msra.mxu0 0.0
  %34 = vmatpush.msra.mxu0 0.0
  %35 = vmatpush.msra.mxu0 0.0
  %36 = vmatpush.msra.mxu0 0.0
  %37 = vmatpush.msra.mxu0 0.0
  %38 = vmatpush.msra.mxu0 0.0
  %39 = vmatpush.msra.mxu0 0.0
  %40 = vmatpush.msra.mxu0 0.0
  %41 = vmatpush.msra.mxu0 0.0
  %42 = vmatpush.msra.mxu0 0.0
  %43 = vmatpush.msra.mxu0 0.0
  %44 = vmatpush.msra.mxu0 0.0
  %45 = vmatpush.msra.mxu0 %v21
  %46 = vmatmul.f32.gmra.mxu0 %v28
  %v47 = vpop.f32.mrf.mxu0
  %v48 = vadd.f32 %v24, %v47
  %49 = vdwg.mxu0
  %v50 = vmax.f32 %v48, 0.0
  %v51 = vld [vmem:[%s3] sm:$0xff]
  %v52 = vld [vmem:[%s3 + $0x8] sm:$0xff]
  %v53 = vld [vmem:[%s3 + $0x10] sm:$0xff]
  %v54 = vld [vmem:[%s3 + $0x18] sm:$0xff]
  %v55 = vld [vmem:[%s3 + $0x20] sm:$0xff]
  %v56 = vld [vmem:[%s3 + $0x28] sm:$0xff]
  %v57 = vld [vmem:[%s3 + $0x30] sm:$0xff]
  %v58 = vld [vmem:[%s3 + $0x38] sm:$0xff]
  %v59 = vld [vmem:[%s4] sm:$0x1]
  %v61 = vperm.slane %v59, 0
  %vm63 = vcmask 523264
  %v65 = vsel %vm63, %v50, 0
  %67 = vmatpush.msra.mxu0 0.0
  %68 = vmatpush.msra.mxu0 0.0
  %69 = vmatpush.msra.mxu0 0.0
  %70 = vmatpush.msra.mxu0 0.0
  %71 = vmatpush.msra.mxu0 0.0
  %72 = vmatpush.msra.mxu0 0.0
  %73 = vmatpush.msra.mxu0 0.0
  %74 = vmatpush.msra.mxu0 0.0
  %75 = vmatpush.msra.mxu0 %v58
  %76 = vmatpush.msra.mxu0 %v57
  %77 = vmatpush.msra.mxu0 %v56
  %78 = vmatpush.msra.mxu0 %v55
  %79 = vmatpush.msra.mxu0 %v54
  %80 = vmatpush.msra.mxu0 %v53
  %81 = vmatpush.msra.mxu0 %v52
  %82 = vmatpush.msra.mxu0 %v51
  %83 = vmatmul.f32.gmra.mxu0 %v65
  %v84 = vpop.f32.mrf.mxu0
  %v85 = vadd.f32 %v61, %v84
  %86 = vdwg.mxu0
  %87 = vst [vmem:[%s5] sm:$0xff] %v85
  // Predicated region
  $region22: #{hypernetwork_2layer_forward.1} parent=0 // pred_check
    _
  $region23: #{hypernetwork_2layer_forward.1} parent=0 // pred_check_branch
    %89 = sbr.rel (0) target = $region25
  $region24: #{hypernetwork_2layer_forward.1} parent=0 // pred_region
    _
  $region25: #{hypernetwork_2layer_forward.1} parent=0 // pred_fallthru
    _
  // Predicated region
  $region26: #{hypernetwork_2layer_forward.1} parent=0 // pred_check
    _
  $region27: #{hypernetwork_2layer_forward.1} parent=0 // pred_check_branch
    %91 = sbr.rel (0) target = $region29
  $region28: #{hypernetwork_2layer_forward.1} parent=0 // pred_region
    _
  $region29: #{hypernetwork_2layer_forward.1} parent=0 // pred_fallthru
    _

</llo_original>
